<compile_context>
chip_gen: v5e
topology: v5e:2x2
jax: 0.10.0
libtpu: 0.0.40
codegen_flags: <defaults>
</compile_context>

<pallas_src>
import numpy as np

import jax
import jax.numpy as jnp
from jax.experimental import pallas as pl
from jax.experimental.pallas import tpu as pltpu

# Synthetic stand-in for cfg.patch_size = (height, width)
PATCH_SIZE = (16, 16)

_LANE = 512           # lane-dense last dim: multiple of 128 lanes and of 4 coords
_MAX_ROW_TILE = 2048  # 2048 x 512 f32 = 4 MiB/buffer; in+out double-buffered = 16 MiB
_VMEM_LIMIT = 28 * 1024 * 1024  # fits v7x (64 MiB physical) with headroom; safe on v5e/v6e


def _round_up(x, m):
    return ((x + m - 1) // m) * m


def _clipboxes_kernel(x_ref, lo_ref, hi_ref, o_ref):
    """Per-coordinate clamp on a lane-dense tile: out = min(max(x, lo), hi).

    lo_ref / hi_ref are (1, _LANE) rows (resident in VMEM) holding the per-lane
    bounds; they broadcast along the sublane (row) axis.  Only 2 VPU ops/vreg.
    """
    o_ref[...] = jnp.minimum(jnp.maximum(x_ref[...], lo_ref[...]), hi_ref[...])


def _make_bound_rows(dtype, height, width):
    """Precompute per-lane lower/upper bound rows of shape (1, _LANE)."""
    if jnp.issubdtype(dtype, jnp.floating):
        neg, pos = -np.inf, np.inf
    elif jnp.issubdtype(dtype, jnp.integer):
        info = jnp.iinfo(dtype)
        neg, pos = int(info.min), int(info.max)
    else:
        raise TypeError(f"unsupported boxes dtype for clip_boxes: {dtype}")

    coord = np.arange(_LANE) % 4                      # 0:x1  1:y1  2:x2  3:y2
    lo = np.where(coord < 2, 0, neg)                  # x1, y1 >= 0
    hi = np.where(coord == 2, width,
                  np.where(coord == 3, height, pos))  # x2 <= w, y2 <= h
    lo_row = jnp.asarray(lo.reshape(1, _LANE), dtype=dtype)
    hi_row = jnp.asarray(hi.reshape(1, _LANE), dtype=dtype)
    return lo_row, hi_row


def _choose_row_tile(rows):
    """Row tile: either the full extent (small inputs) or a multiple of 8."""
    if rows <= 64:
        return rows  # single block; always legal, lowest overhead
    # At most _MAX_ROW_TILE rows per block; at least ~4 blocks (even-ish) so
    # v7x's two TensorCores both get work from the "parallel" grid axis.
    n_blocks = max(4, pl.cdiv(rows, _MAX_ROW_TILE))
    n_blocks += n_blocks % 2
    tile = _round_up(pl.cdiv(rows, n_blocks), 8)
    return min(tile, _MAX_ROW_TILE)


def clip_boxes(boxes, patch_size=PATCH_SIZE):
    """Pallas equivalent of ClipBoxes.forward (returns the clipped boxes)."""
    height, width = patch_size
    B, N, C = boxes.shape
    assert C == 4, "boxes last dim must be 4 (x1, y1, x2, y2)"
    dtype = boxes.dtype
    total = B * N * C
    if total == 0:
        return boxes

    # Flatten and pad to a multiple of the lane-dense width so the tiled,
    # full-width-store path is always taken (padding is clamped then sliced off).
    flat = boxes.reshape(total)
    padded_total = _round_up(total, _LANE)
    if padded_total != total:
        flat = jnp.pad(flat, (0, padded_total - total))
    rows = padded_total // _LANE
    x2d = flat.reshape(rows, _LANE)

    lo_row, hi_row = _make_bound_rows(dtype, height, width)

    row_tile = _choose_row_tile(rows)
    grid = (pl.cdiv(rows, row_tile),)

    out2d = pl.pallas_call(
        _clipboxes_kernel,
        out_shape=jax.ShapeDtypeStruct((rows, _LANE), dtype),
        grid_spec=pl.GridSpec(
            grid=grid,
            in_specs=[
                pl.BlockSpec((row_tile, _LANE), lambda i: (i, 0)),
                pl.BlockSpec((1, _LANE), lambda i: (0, 0)),  # lo: resident
                pl.BlockSpec((1, _LANE), lambda i: (0, 0)),  # hi: resident
            ],
            out_specs=pl.BlockSpec((row_tile, _LANE), lambda i: (i, 0)),
        ),
        # Mirror the PyTorch in-place clamp: reuse the (temp/donated) input buffer.
        input_output_aliases={0: 0},
        compiler_params=pltpu.CompilerParams(
            dimension_semantics=("parallel",),
            vmem_limit_bytes=_VMEM_LIMIT,
        ),
    )(x2d, lo_row, hi_row)

    out = out2d.reshape(padded_total)
    if padded_total != total:
        out = out[:total]
    return out.reshape(B, N, C)


def _reference_clip(boxes, patch_size):
    """Plain-JAX reference mirroring the PyTorch per-coordinate clamps."""
    h, w = patch_size
    ref = boxes
    ref = ref.at[:, :, 0].set(jnp.maximum(ref[:, :, 0], 0.0))
    ref = ref.at[:, :, 1].set(jnp.maximum(ref[:, :, 1], 0.0))
    ref = ref.at[:, :, 2].set(jnp.minimum(ref[:, :, 2], float(w)))
    ref = ref.at[:, :, 3].set(jnp.minimum(ref[:, :, 3], float(h)))
    return ref


if __name__ == "__main__":
    key = jax.random.PRNGKey(0)

    # Case 1: small shape matching the module's convention (padded path).
    B, N = 2, 8
    boxes = jax.random.uniform(
        key, (B, N, 4), dtype=jnp.float32, minval=-8.0, maxval=24.0
    )
    ref = _reference_clip(boxes, PATCH_SIZE)  # computed before the (aliased) call
    out = jax.block_until_ready(clip_boxes(boxes))
    assert out.shape == boxes.shape
    assert jnp.allclose(out, ref), "mismatch vs reference (padded path)"

    # Case 2: clean lane-dense path, single block (2*512*4 = 4096 elems -> 8 rows).
    boxes2 = jax.random.uniform(
        jax.random.PRNGKey(0), (2, 512, 4), dtype=jnp.float32,
        minval=-8.0, maxval=24.0,
    )
    ref2 = _reference_clip(boxes2, PATCH_SIZE)
    out2 = jax.block_until_ready(clip_boxes(boxes2))
    assert jnp.allclose(out2, ref2), "mismatch vs reference (lane-dense path)"

    # Case 3: multi-block grid path (4*8192*4 = 131072 elems -> 256 rows, grid 4).
    boxes3 = jax.random.uniform(
        jax.random.PRNGKey(0), (4, 8192, 4), dtype=jnp.float32,
        minval=-8.0, maxval=24.0,
    )
    ref3 = _reference_clip(boxes3, PATCH_SIZE)
    out3 = jax.block_until_ready(clip_boxes(boxes3))
    assert jnp.allclose(out3, ref3), "mismatch vs reference (tiled grid path)"

    print("KERNEL_OK")
</pallas_src>

<mosaic_0001>
module attributes {stable_mosaic.version = 11 : i64} {
  func.func @_clipboxes_kernel(%arg0: i32, %arg1: memref<1x512xf32, #tpu.memory_space<vmem>>, %arg2: memref<1x512xf32, #tpu.memory_space<vmem>>, %arg3: memref<1x512xf32, #tpu.memory_space<vmem>>, %arg4: memref<1x512xf32, #tpu.memory_space<vmem>>) attributes {dimension_semantics = [#tpu.dimension_semantics<parallel>], iteration_bounds = array<i64: 1>, scalar_prefetch = 0 : i64, scratch_operands = 0 : i64, tpu.core_type = #tpu.core_type<tc>, window_params = [{transform_indices = @transform_0, window_bounds = array<i64: 1, 512>}, {pipeline_mode = #tpu.pipeline_mode<synchronous>, transform_indices = @transform_1, window_bounds = array<i64: 1, 512>}, {pipeline_mode = #tpu.pipeline_mode<synchronous>, transform_indices = @transform_2, window_bounds = array<i64: 1, 512>}, {transform_indices = @transform_3, window_bounds = array<i64: 1, 512>}]} {
    %c0 = arith.constant 0 : index
    %c0_0 = arith.constant 0 : index
    %0 = vector.load %arg1[%c0, %c0_0] : memref<1x512xf32, #tpu.memory_space<vmem>>, vector<1x512xf32>
    %c0_1 = arith.constant 0 : index
    %c0_2 = arith.constant 0 : index
    %1 = vector.load %arg2[%c0_1, %c0_2] : memref<1x512xf32, #tpu.memory_space<vmem>>, vector<1x512xf32>
    %2 = arith.maximumf %0, %1 : vector<1x512xf32>
    %c0_3 = arith.constant 0 : index
    %c0_4 = arith.constant 0 : index
    %3 = vector.load %arg3[%c0_3, %c0_4] : memref<1x512xf32, #tpu.memory_space<vmem>>, vector<1x512xf32>
    %4 = arith.minimumf %2, %3 : vector<1x512xf32>
    %c0_5 = arith.constant 0 : index
    %c0_6 = arith.constant 0 : index
    %5 = vector.load %arg4[%c0_5, %c0_6] : memref<1x512xf32, #tpu.memory_space<vmem>>, vector<1x512xf32>
    tpu.vector_store %arg4[%c0_5, %c0_6], %4 {strides = array<i32>} : memref<1x512xf32, #tpu.memory_space<vmem>>, vector<1x512xf32>,
    return
  }
  func.func @transform_0(%arg0: i32) -> (i32, i32) {
    %c0_i32 = arith.constant 0 : i32
    %c0_i32_0 = arith.constant 0 : i32
    return %arg0, %c0_i32 : i32, i32
  }
  func.func @transform_1(%arg0: i32) -> (i32, i32) {
    %c0_i32 = arith.constant 0 : i32
    %c0_i32_0 = arith.constant 0 : i32
    %c0_i32_1 = arith.constant 0 : i32
    return %c0_i32, %c0_i32_0 : i32, i32
  }
  func.func @transform_2(%arg0: i32) -> (i32, i32) {
    %c0_i32 = arith.constant 0 : i32
    %c0_i32_0 = arith.constant 0 : i32
    %c0_i32_1 = arith.constant 0 : i32
    return %c0_i32, %c0_i32_0 : i32, i32
  }
  func.func @transform_3(%arg0: i32) -> (i32, i32) {
    %c0_i32 = arith.constant 0 : i32
    %c0_i32_0 = arith.constant 0 : i32
    return %arg0, %c0_i32 : i32, i32
  }
}

</mosaic_0001>

<llo_original>
// kernel: tpu_custom_call.1
$region0: #{tpu_custom_call.1}
  #allocation0 [shape = 'u32[]', space=smem, size = 0x4, offset = 0x4, fixed_abs, tag = 'smem constant byte address 0x4 - core index']
  #allocation1 [shape = 'u32[72,128]{1,0:T(1,128)}', space=vmem, size = 0x9000, scoped, tag = 'internal scratch']
  %s0 = inlined_call_operand.hbm [shape: f32[1,512], index: 0, kind: input, shape index: {}, may-alias: {0,3}]
  %s1 = inlined_call_operand.vmem [shape: f32[1,512], index: 1, kind: input, shape index: {}]
  %s2 = inlined_call_operand.vmem [shape: f32[1,512], index: 2, kind: input, shape index: {}]
  %s3 = inlined_call_operand.hbm [shape: f32[1,512], index: 3, kind: output, shape index: {}, may-alias: {0,3}]
  %s4 = sld [smem:[#allocation0]]
  $region26: #{tpu_custom_call.1} parent=0
    _
  %s6 = ssub.s32 1, %s4
  %s7 = scalar_select 0, %s6, %s4
  $region1: #{tpu_custom_call.1} parent=0
    #allocation2 [shape = 'u8[2048]{0}', space=vmem, size = 0x800, scoped, tag = 'input window, operand 0, single buffered']
    #allocation3 [shape = 's32[1]{0}', space=sflag, size = 0x4, scoped, tag = 'scoped memory for tpu_custom_call.1']
    #allocation4 [shape = 's32[1]{0}', space=sflag, size = 0x4, scoped, tag = 'scoped memory for tpu_custom_call.1']
    #allocation5 [shape = 'u8[2048]{0}', space=vmem, size = 0x800, scoped, tag = 'output window, operand 0, single buffered']
    %8 = vsyncpa [#allocation3], 0
    %9 = vsyncpa [#allocation4], 0
    // Predicated region
    $region2: #{tpu_custom_call.1} parent=1 // pred_check
      _
    $region3: #{tpu_custom_call.1} parent=1 // pred_check_branch
      %11 = sbr.rel (0) target = $region5
    $region4: #{tpu_custom_call.1} parent=1 // pred_region
      %13 = vsyncadd [#allocation3], 0
      %s15 = sshll.u32 %s0, 4
      %s16 = int_to_ptr.hbm [resolvable:$true] %s15
      %s17 = sshll.u32 [#allocation2], 4
      %s18 = int_to_ptr.vmem [resolvable:$true] %s17
      %20 = dma.hbm_to_vmem [thread:$0]  %s16, 64, %s18, [#allocation3]
    $region5: #{tpu_custom_call.1} parent=1 // pred_fallthru
      _
    // Predicated region
    $region6: #{tpu_custom_call.1} parent=1 // pred_check
      _
    $region7: #{tpu_custom_call.1} parent=1 // pred_check_branch
      %22 = sbr.rel (0) target = $region9
    $region8: #{tpu_custom_call.1} parent=1 // pred_region
      _
    $region9: #{tpu_custom_call.1} parent=1 // pred_fallthru
      _
    // Predicated region
    $region10: #{tpu_custom_call.1} parent=1 // pred_check
      _
    $region11: #{tpu_custom_call.1} parent=1 // pred_check_branch
      %24 = sbr.rel (0) target = $region13
    $region12: #{tpu_custom_call.1} parent=1 // pred_region
      _
    $region13: #{tpu_custom_call.1} parent=1 // pred_fallthru
      _
    // Predicated region
    $region14: #{tpu_custom_call.1} parent=1 // pred_check
      _
    $region15: #{tpu_custom_call.1} parent=1 // pred_check_branch
      %26 = sbr.rel (0) target = $region17
    $region16: #{tpu_custom_call.1} parent=1 // pred_region
      %28 = dma.done [#allocation3], 64
    $region17: #{tpu_custom_call.1} parent=1 // pred_fallthru
      _
    %v29 = vld [vmem:[#allocation2] sm:$0xf]
    %v30 = vld [vmem:[%s1] sm:$0xf]
    %v31 = vmax.f32 %v29, %v30
    %v32 = vld [vmem:[%s2] sm:$0xf]
    %v33 = vmin.f32 %v31, %v32
    %v34 = vlaneseq
    %vm35 = vcmp.ge.s32.totalorder %v34, 0
    %vm36 = vcmp.lt.s32.totalorder %v34, 512
    %vm37 = vmand %vm35, %vm36
    %38 = vst.msk [vmem:[#allocation5] sm:$0xf] %vm37, %v33
    // Predicated region
    $region18: #{tpu_custom_call.1} parent=1 // pred_check
      _
    $region19: #{tpu_custom_call.1} parent=1 // pred_check_branch
      %40 = sbr.rel (0) target = $region21
    $region20: #{tpu_custom_call.1} parent=1 // pred_region
      %42 = vsyncadd [#allocation4], 0
      %s44 = sshll.u32 [#allocation5], 4
      %s45 = int_to_ptr.vmem [resolvable:$true] %s44
      %s46 = sshll.u32 %s3, 4
      %s47 = int_to_ptr.hbm [resolvable:$true] %s46
      %49 = dma.vmem_to_hbm [thread:$0]  %s45, 64, %s47, [#allocation4]
    $region21: #{tpu_custom_call.1} parent=1 // pred_fallthru
      _
    // Predicated region
    $region22: #{tpu_custom_call.1} parent=1 // pred_check
      _
    $region23: #{tpu_custom_call.1} parent=1 // pred_check_branch
      %51 = sbr.rel (0) target = $region25
    $region24: #{tpu_custom_call.1} parent=1 // pred_region
      %53 = dma.done [#allocation4], 64
    $region25: #{tpu_custom_call.1} parent=1 // pred_fallthru
      _
    %54 = vsyncpa [#allocation3], 1
    %55 = vsyncpa [#allocation4], 1

</llo_original>
